<compile_context>
chip_gen: v7x
topology: tpu7x:2x2x1
jax: 0.10.0
libtpu: 0.0.40
codegen_flags: <defaults>
</compile_context>

<pallas_src>
import jax
import jax.numpy as jnp
from jax.experimental import pallas as pl
from jax.experimental.pallas import tpu as pltpu


def _round_up(x, m):
    return ((x + m - 1) // m) * m


def qnet_kernel(x_ref, w1_ref, b1_ref, w2_ref, b2_ref, w3_ref, b3_ref, o_ref):
    # x is already bf16; matmuls accumulate in f32; bias add + ReLU in f32.
    x = x_ref[...]
    h1 = jnp.dot(x, w1_ref[...], preferred_element_type=jnp.float32) + b1_ref[...]
    h1 = jnp.maximum(h1, 0.0)
    h2 = (
        jnp.dot(h1.astype(jnp.bfloat16), w2_ref[...], preferred_element_type=jnp.float32)
        + b2_ref[...]
    )
    h2 = jnp.maximum(h2, 0.0)
    q = jnp.dot(h2.astype(jnp.bfloat16), w3_ref[...], preferred_element_type=jnp.float32)
    # w3 is lane-padded to 128 for the MXU; write back only the real columns.
    o_ref[...] = q[:, : o_ref.shape[1]] + b3_ref[...]


def prepare_params(params):
    """One-time prep: cast weights to bf16, pad layer-3 out-features to 128 lanes
    (MXU operand only; the kernel output keeps the true action_size width)."""
    w1, b1, w2, b2, w3, b3 = params
    action_size = w3.shape[1]
    a_pad = _round_up(action_size, 128)
    w3p = jnp.zeros((w3.shape[0], a_pad), jnp.float32).at[:, :action_size].set(w3)
    return (
        w1.astype(jnp.bfloat16),
        b1.astype(jnp.float32),
        w2.astype(jnp.bfloat16),
        b2.astype(jnp.float32),
        w3p.astype(jnp.bfloat16),
        b3.astype(jnp.float32),
    )


def qnetwork_forward(state, prepped, *, block_b=4096, min_pallas_batch=256):
    w1, b1, w2, b2, w3p, b3 = prepped
    B, S = state.shape
    H = w1.shape[1]
    A = b3.shape[1]

    # Cast activations to bf16 once here (halves HBM read + VMEM footprint).
    x = state.astype(jnp.bfloat16)

    if B < min_pallas_batch:
        # Fused XLA fast path: for tiny online-inference batches a pallas_call
        # per step is pure dispatch / DMA-setup overhead.
        h = jnp.maximum(jnp.dot(x, w1, preferred_element_type=jnp.float32) + b1, 0.0)
        h = jnp.maximum(
            jnp.dot(h.astype(jnp.bfloat16), w2, preferred_element_type=jnp.float32) + b2,
            0.0,
        )
        q = jnp.dot(h.astype(jnp.bfloat16), w3p, preferred_element_type=jnp.float32)
        return q[:, :A] + b3

    if B < 8:  # only reachable if min_pallas_batch is forced below 8
        x = jnp.zeros((8, S), x.dtype).at[:B].set(x)
    Bp = x.shape[0]

    # Tile choice: at least 2 grid steps so both v7x TensorCores get work,
    # at most block_b rows per step (VMEM), and at least ~8 rows per step.
    # The boundary block (B not a multiple of tb) is handled by Pallas: OOB
    # output rows are masked, which is safe since rows are independent.
    n_steps = min(max(2, pl.cdiv(Bp, block_b)), max(1, Bp // 8))
    tb = min(block_b, _round_up(pl.cdiv(Bp, n_steps), 8))
    grid = (pl.cdiv(Bp, tb),)

    const = lambda i: (0, 0)
    out = pl.pallas_call(
        qnet_kernel,
        out_shape=jax.ShapeDtypeStruct((Bp, A), jnp.float32),
        grid=grid,
        in_specs=[
            pl.BlockSpec((tb, S), lambda i: (i, 0)),  # streamed activations (bf16)
            pl.BlockSpec((S, H), const),              # VMEM-resident weights/biases
            pl.BlockSpec((1, H), const),
            pl.BlockSpec((H, H), const),
            pl.BlockSpec((1, H), const),
            pl.BlockSpec((H, w3p.shape[1]), const),
            pl.BlockSpec((1, A), const),
        ],
        # Output at its true width: last dim equals the full array dim, so the
        # spec is legal and HBM writeback is not lane-padded.
        out_specs=pl.BlockSpec((tb, A), lambda i: (i, 0)),
        compiler_params=pltpu.CompilerParams(
            dimension_semantics=("parallel",),
            # Explicit limit: ~12 MB actual usage at tb=4096; v5e's scoped
            # default is only 16 MiB, v7x physical per-TC VMEM is 64 MiB.
            vmem_limit_bytes=40 * 1024 * 1024,
        ),
    )(x, w1, b1, w2, b2, w3p, b3)
    return out[:B]


def xavier_uniform(key, fan_in, fan_out):
    # matches torch.nn.init.xavier_uniform_ (gain=1.0)
    limit = (6.0 / (fan_in + fan_out)) ** 0.5
    # stored as (in, out) so the kernel does x @ W
    return jax.random.uniform(key, (fan_in, fan_out), jnp.float32, -limit, limit)


def init_params(key, state_size, action_size, hidden_size=128):
    k1, k2, k3 = jax.random.split(key, 3)
    w1 = xavier_uniform(k1, state_size, hidden_size)
    b1 = jnp.full((1, hidden_size), 0.01, jnp.float32)
    w2 = xavier_uniform(k2, hidden_size, hidden_size)
    b2 = jnp.full((1, hidden_size), 0.01, jnp.float32)
    w3 = xavier_uniform(k3, hidden_size, action_size)
    b3 = jnp.full((1, action_size), 0.01, jnp.float32)
    return (w1, b1, w2, b2, w3, b3)


def reference_forward(state, params):
    # Mirrors the kernel's bf16-input / f32-accumulate arithmetic.
    w1, b1, w2, b2, w3, b3 = params
    bf = jnp.bfloat16
    h = jnp.dot(state.astype(bf), w1.astype(bf), preferred_element_type=jnp.float32) + b1
    h = jnp.maximum(h, 0.0)
    h = jnp.dot(h.astype(bf), w2.astype(bf), preferred_element_type=jnp.float32) + b2
    h = jnp.maximum(h, 0.0)
    return jnp.dot(h.astype(bf), w3.astype(bf), preferred_element_type=jnp.float32) + b3


if __name__ == "__main__":
    key = jax.random.PRNGKey(0)
    k_param, k_s1, k_s2 = jax.random.split(key, 3)

    state_size, action_size, hidden_size = 8, 4, 128
    params = init_params(k_param, state_size, action_size, hidden_size)
    prepped = prepare_params(params)

    # 1) Tiny online-inference batch -> fused XLA fast path.
    s_small = jax.random.normal(k_s1, (2, state_size), jnp.float32)
    out_small = jax.block_until_ready(qnetwork_forward(s_small, prepped))
    ref_small = reference_forward(s_small, params)
    assert out_small.shape == (2, action_size)
    assert jnp.allclose(out_small, ref_small, atol=1e-3, rtol=1e-3)

    # 2) Larger batch (not a multiple of 8 or of the tile) -> Pallas kernel,
    #    exercising the boundary block and the >=2-step grid.
    B = 333
    s_big = jax.random.normal(k_s2, (B, state_size), jnp.float32)
    out_big = jax.block_until_ready(qnetwork_forward(s_big, prepped))
    ref_big = reference_forward(s_big, params)
    assert out_big.shape == (B, action_size)
    assert jnp.allclose(out_big, ref_big, atol=1e-3, rtol=1e-3)

    print("KERNEL_OK")
</pallas_src>

<mosaic_0001>
module attributes {stable_mosaic.version = 11 : i64} {
  func.func @qnet_kernel(%arg0: i32, %arg1: memref<168x8xbf16, #tpu.memory_space<vmem>>, %arg2: memref<8x128xbf16, #tpu.memory_space<vmem>>, %arg3: memref<1x128xf32, #tpu.memory_space<vmem>>, %arg4: memref<128x128xbf16, #tpu.memory_space<vmem>>, %arg5: memref<1x128xf32, #tpu.memory_space<vmem>>, %arg6: memref<128x128xbf16, #tpu.memory_space<vmem>>, %arg7: memref<1x4xf32, #tpu.memory_space<vmem>>, %arg8: memref<168x4xf32, #tpu.memory_space<vmem>>) attributes {dimension_semantics = [#tpu.dimension_semantics<parallel>], iteration_bounds = array<i64: 2>, scalar_prefetch = 0 : i64, scratch_operands = 0 : i64, tpu.core_type = #tpu.core_type<tc>, window_params = [{transform_indices = @transform_0, window_bounds = array<i64: 168, 8>}, {pipeline_mode = #tpu.pipeline_mode<synchronous>, transform_indices = @transform_1, window_bounds = array<i64: 8, 128>}, {pipeline_mode = #tpu.pipeline_mode<synchronous>, transform_indices = @transform_2, window_bounds = array<i64: 1, 128>}, {pipeline_mode = #tpu.pipeline_mode<synchronous>, transform_indices = @transform_3, window_bounds = array<i64: 128, 128>}, {pipeline_mode = #tpu.pipeline_mode<synchronous>, transform_indices = @transform_4, window_bounds = array<i64: 1, 128>}, {pipeline_mode = #tpu.pipeline_mode<synchronous>, transform_indices = @transform_5, window_bounds = array<i64: 128, 128>}, {pipeline_mode = #tpu.pipeline_mode<synchronous>, transform_indices = @transform_6, window_bounds = array<i64: 1, 4>}, {transform_indices = @transform_7, window_bounds = array<i64: 168, 4>}]} {
    %c0 = arith.constant 0 : index
    %c0_0 = arith.constant 0 : index
    %0 = vector.load %arg1[%c0, %c0_0] : memref<168x8xbf16, #tpu.memory_space<vmem>>, vector<168x8xbf16>
    %c0_1 = arith.constant 0 : index
    %c0_2 = arith.constant 0 : index
    %1 = vector.load %arg2[%c0_1, %c0_2] : memref<8x128xbf16, #tpu.memory_space<vmem>>, vector<8x128xbf16>
    %cst = arith.constant dense<0.000000e+00> : vector<168x128xf32>
    %2 = tpu.matmul %0, %1, %cst {dimension_numbers = #tpu.dot_dimension_numbers<[1], [0], [0], [1], [0, 0, 1, 1], [], []>} : vector<168x8xbf16>, vector<8x128xbf16>, vector<168x128xf32> -> vector<168x128xf32>
    %c0_3 = arith.constant 0 : index
    %c0_4 = arith.constant 0 : index
    %3 = vector.load %arg3[%c0_3, %c0_4] : memref<1x128xf32, #tpu.memory_space<vmem>>, vector<1x128xf32>
    %4 = vector.broadcast %3 : vector<1x128xf32> to vector<168x128xf32>
    %5 = arith.addf %2, %4 : vector<168x128xf32>
    %cst_5 = arith.constant 0.000000e+00 : f32
    %6 = vector.broadcast %cst_5 : f32 to vector<168x128xf32>
    %7 = arith.maximumf %5, %6 : vector<168x128xf32>
    %8 = arith.truncf %7 : vector<168x128xf32> to vector<168x128xbf16>
    %c0_6 = arith.constant 0 : index
    %c0_7 = arith.constant 0 : index
    %9 = vector.load %arg4[%c0_6, %c0_7] : memref<128x128xbf16, #tpu.memory_space<vmem>>, vector<128x128xbf16>
    %cst_8 = arith.constant dense<0.000000e+00> : vector<168x128xf32>
    %10 = tpu.matmul %8, %9, %cst_8 {dimension_numbers = #tpu.dot_dimension_numbers<[1], [0], [0], [1], [0, 0, 1, 1], [], []>} : vector<168x128xbf16>, vector<128x128xbf16>, vector<168x128xf32> -> vector<168x128xf32>
    %c0_9 = arith.constant 0 : index
    %c0_10 = arith.constant 0 : index
    %11 = vector.load %arg5[%c0_9, %c0_10] : memref<1x128xf32, #tpu.memory_space<vmem>>, vector<1x128xf32>
    %12 = vector.broadcast %11 : vector<1x128xf32> to vector<168x128xf32>
    %13 = arith.addf %10, %12 : vector<168x128xf32>
    %cst_11 = arith.constant 0.000000e+00 : f32
    %14 = vector.broadcast %cst_11 : f32 to vector<168x128xf32>
    %15 = arith.maximumf %13, %14 : vector<168x128xf32>
    %16 = arith.truncf %15 : vector<168x128xf32> to vector<168x128xbf16>
    %c0_12 = arith.constant 0 : index
    %c0_13 = arith.constant 0 : index
    %17 = vector.load %arg6[%c0_12, %c0_13] : memref<128x128xbf16, #tpu.memory_space<vmem>>, vector<128x128xbf16>
    %cst_14 = arith.constant dense<0.000000e+00> : vector<168x128xf32>
    %18 = tpu.matmul %16, %17, %cst_14 {dimension_numbers = #tpu.dot_dimension_numbers<[1], [0], [0], [1], [0, 0, 1, 1], [], []>} : vector<168x128xbf16>, vector<128x128xbf16>, vector<168x128xf32> -> vector<168x128xf32>
    %19 = vector.extract_strided_slice %18 {offsets = [0, 0], sizes = [168, 4], strides = [1, 1]} : vector<168x128xf32> to vector<168x4xf32>
    %c0_15 = arith.constant 0 : index
    %c0_16 = arith.constant 0 : index
    %20 = vector.load %arg7[%c0_15, %c0_16] : memref<1x4xf32, #tpu.memory_space<vmem>>, vector<1x4xf32>
    %21 = vector.broadcast %20 : vector<1x4xf32> to vector<168x4xf32>
    %22 = arith.addf %19, %21 : vector<168x4xf32>
    %c0_17 = arith.constant 0 : index
    %c0_18 = arith.constant 0 : index
    %23 = vector.load %arg8[%c0_17, %c0_18] : memref<168x4xf32, #tpu.memory_space<vmem>>, vector<168x4xf32>
    tpu.vector_store %arg8[%c0_17, %c0_18], %22 {strides = array<i32>} : memref<168x4xf32, #tpu.memory_space<vmem>>, vector<168x4xf32>,
    return
  }
  func.func @transform_0(%arg0: i32) -> (i32, i32) {
    %c0_i32 = arith.constant 0 : i32
    %c0_i32_0 = arith.constant 0 : i32
    return %arg0, %c0_i32 : i32, i32
  }
  func.func @transform_1(%arg0: i32) -> (i32, i32) {
    %c0_i32 = arith.constant 0 : i32
    %c0_i32_0 = arith.constant 0 : i32
    %c0_i32_1 = arith.constant 0 : i32
    return %c0_i32, %c0_i32_0 : i32, i32
  }
  func.func @transform_2(%arg0: i32) -> (i32, i32) {
    %c0_i32 = arith.constant 0 : i32
    %c0_i32_0 = arith.constant 0 : i32
    %c0_i32_1 = arith.constant 0 : i32
    return %c0_i32, %c0_i32_0 : i32, i32
  }
  func.func @transform_3(%arg0: i32) -> (i32, i32) {
    %c0_i32 = arith.constant 0 : i32
    %c0_i32_0 = arith.constant 0 : i32
    %c0_i32_1 = arith.constant 0 : i32
    return %c0_i32, %c0_i32_0 : i32, i32
  }
  func.func @transform_4(%arg0: i32) -> (i32, i32) {
    %c0_i32 = arith.constant 0 : i32
    %c0_i32_0 = arith.constant 0 : i32
    %c0_i32_1 = arith.constant 0 : i32
    return %c0_i32, %c0_i32_0 : i32, i32
  }
  func.func @transform_5(%arg0: i32) -> (i32, i32) {
    %c0_i32 = arith.constant 0 : i32
    %c0_i32_0 = arith.constant 0 : i32
    %c0_i32_1 = arith.constant 0 : i32
    return %c0_i32, %c0_i32_0 : i32, i32
  }
  func.func @transform_6(%arg0: i32) -> (i32, i32) {
    %c0_i32 = arith.constant 0 : i32
    %c0_i32_0 = arith.constant 0 : i32
    %c0_i32_1 = arith.constant 0 : i32
    return %c0_i32, %c0_i32_0 : i32, i32
  }
  func.func @transform_7(%arg0: i32) -> (i32, i32) {
    %c0_i32 = arith.constant 0 : i32
    %c0_i32_0 = arith.constant 0 : i32
    return %arg0, %c0_i32 : i32, i32
  }
}

</mosaic_0001>

<llo_original>
// kernel: tpu_custom_call.1
$region0: #{tpu_custom_call.1}
  #allocation0 [shape = 'u32[]', space=smem, size = 0x4, offset = 0x4, fixed_abs, tag = 'smem constant byte address 0x4 - core index']
  #allocation1 [shape = 'u32[144,128]{1,0:T(1,128)}', space=vmem, size = 0x12000, scoped, tag = 'internal scratch']
  %s0 = inlined_call_operand.vmem [shape: bf16[333,8], index: 0, kind: input, shape index: {}]
  %s1 = inlined_call_operand.vmem [shape: bf16[8,128], index: 1, kind: input, shape index: {}]
  %s2 = inlined_call_operand.vmem [shape: f32[1,128], index: 2, kind: input, shape index: {}]
  %s3 = inlined_call_operand.vmem [shape: bf16[128,128], index: 3, kind: input, shape index: {}]
  %s4 = inlined_call_operand.vmem [shape: f32[1,128], index: 4, kind: input, shape index: {}]
  %s5 = inlined_call_operand.vmem [shape: bf16[128,128], index: 5, kind: input, shape index: {}]
  %s6 = inlined_call_operand.vmem [shape: f32[1,4], index: 6, kind: input, shape index: {}]
  %s7 = inlined_call_operand.vmem [shape: f32[333,4], index: 7, kind: output, shape index: {}]
  %s8 = sld [smem:[#allocation0]]
  $region61: #{tpu_custom_call.1} parent=0
    _
  %s10 = ssub.s32 1, %s8
  %s11 = scalar_select 0, %s10, %s8
  loop: start=0, step=1, limit=4
  $region2: #{tpu_custom_call.1} parent=0 // loop_pre_header
    _
  $region3: #{tpu_custom_call.1} parent=0 // loop_header
    %s13 = sphi 0, %s17
    %p14 = scmp.ge.s32.totalorder %s13, 4
    %s23 = sphi 0, %s25
    %s26 = sphi 0, %s23
    %s27 = sphi 0, %s26
    %s43 = sphi 0, %s27
    %s47 = sphi 0, %s47
    %s49 = sphi 0, %s47
    %s50 = sphi 0, %s49
    %s64 = sphi 0, %s50
    %s68 = sphi 0, %s68
    %s70 = sphi 0, %s68
    %s71 = sphi 0, %s70
    %s85 = sphi 0, %s71
    %s89 = sphi 0, %s89
    %s91 = sphi 0, %s89
    %s92 = sphi 0, %s91
    %s106 = sphi 0, %s92
    %s110 = sphi 0, %s110
    %s112 = sphi 0, %s110
    %s113 = sphi 0, %s112
    %s127 = sphi 0, %s113
    %s131 = sphi 0, %s131
    %s133 = sphi 0, %s131
    %s134 = sphi 0, %s133
    %s148 = sphi 0, %s134
    %s152 = sphi 0, %s152
    %s154 = sphi 0, %s152
    %s155 = sphi 0, %s154
    %s169 = sphi 0, %s155
    %s175 = sphi 0, %s177
    %s178 = sphi 0, %s175
    %s179 = sphi 0, %s178
    %s195 = sphi 0, %s179
  $region4: #{tpu_custom_call.1} parent=0 // loop_header_branch
    %16 = sbr.rel (%p14) target = $region8
  $region5: #{tpu_custom_call.1} parent=0 // loop_body
    %s18 = ssub.s32 %s13, 1
    %s19 = ssub.s32 %s13, 2
    %s20 = sadd.s32 %s13, 1
    %s21 = ssub.s32 %s13, %s20
    %p22 = scmp.eq.s32.totalorder %s21, 0
    %s24 = sadd.s32 %s23, 1
    %s25 = scalar_select %p22, %s23, %s24
    %p28 = pneg %p22
    %p29 = scmp.eq.s32.totalorder %s13, 1
    %p30 = por %p28, %p29
    %p31 = scmp.ne.s32.totalorder %s23, %s26
    %p32 = scmp.eq.s32.totalorder %s13, 0
    %p33 = por %p31, %p32
    %p34 = scmp.ne.s32.totalorder %s23, %s26
    %p35 = scmp.eq.s32.totalorder %s18, 1
    %p36 = por %p34, %p35
    %p37 = scmp.ne.s32.totalorder %s26, %s27
    %p38 = scmp.eq.s32.totalorder %s18, 0
    %p39 = por %p37, %p38
    %p40 = scmp.ne.s32.totalorder %s26, %s27
    %p41 = scmp.eq.s32.totalorder %s19, 1
    %p42 = por %p40, %p41
    %p44 = scmp.ne.s32.totalorder %s27, %s43
    %p45 = scmp.eq.s32.totalorder %s19, 0
    %p46 = por %p44, %p45
    %s48 = sadd.s32 %s47, 1
    %p51 = scmp.eq.s32.totalorder %s13, 1
    %p52 = scmp.ne.s32.totalorder %s47, %s49
    %p53 = scmp.eq.s32.totalorder %s13, 0
    %p54 = por %p52, %p53
    %p55 = scmp.ne.s32.totalorder %s47, %s49
    %p56 = scmp.eq.s32.totalorder %s18, 1
    %p57 = por %p55, %p56
    %p58 = scmp.ne.s32.totalorder %s49, %s50
    %p59 = scmp.eq.s32.totalorder %s18, 0
    %p60 = por %p58, %p59
    %p61 = scmp.ne.s32.totalorder %s49, %s50
    %p62 = scmp.eq.s32.totalorder %s19, 1
    %p63 = por %p61, %p62
    %p65 = scmp.ne.s32.totalorder %s50, %s64
    %p66 = scmp.eq.s32.totalorder %s19, 0
    %p67 = por %p65, %p66
    %s69 = sadd.s32 %s68, 1
    %p72 = scmp.eq.s32.totalorder %s13, 1
    %p73 = scmp.ne.s32.totalorder %s68, %s70
    %p74 = scmp.eq.s32.totalorder %s13, 0
    %p75 = por %p73, %p74
    %p76 = scmp.ne.s32.totalorder %s68, %s70
    %p77 = scmp.eq.s32.totalorder %s18, 1
    %p78 = por %p76, %p77
    %p79 = scmp.ne.s32.totalorder %s70, %s71
    %p80 = scmp.eq.s32.totalorder %s18, 0
    %p81 = por %p79, %p80
    %p82 = scmp.ne.s32.totalorder %s70, %s71
    %p83 = scmp.eq.s32.totalorder %s19, 1
    %p84 = por %p82, %p83
    %p86 = scmp.ne.s32.totalorder %s71, %s85
    %p87 = scmp.eq.s32.totalorder %s19, 0
    %p88 = por %p86, %p87
    %s90 = sadd.s32 %s89, 1
    %p93 = scmp.eq.s32.totalorder %s13, 1
    %p94 = scmp.ne.s32.totalorder %s89, %s91
    %p95 = scmp.eq.s32.totalorder %s13, 0
    %p96 = por %p94, %p95
    %p97 = scmp.ne.s32.totalorder %s89, %s91
    %p98 = scmp.eq.s32.totalorder %s18, 1
    %p99 = por %p97, %p98
    %p100 = scmp.ne.s32.totalorder %s91, %s92
    %p101 = scmp.eq.s32.totalorder %s18, 0
    %p102 = por %p100, %p101
    %p103 = scmp.ne.s32.totalorder %s91, %s92
    %p104 = scmp.eq.s32.totalorder %s19, 1
    %p105 = por %p103, %p104
    %p107 = scmp.ne.s32.totalorder %s92, %s106
    %p108 = scmp.eq.s32.totalorder %s19, 0
    %p109 = por %p107, %p108
    %s111 = sadd.s32 %s110, 1
    %p114 = scmp.eq.s32.totalorder %s13, 1
    %p115 = scmp.ne.s32.totalorder %s110, %s112
    %p116 = scmp.eq.s32.totalorder %s13, 0
    %p117 = por %p115, %p116
    %p118 = scmp.ne.s32.totalorder %s110, %s112
    %p119 = scmp.eq.s32.totalorder %s18, 1
    %p120 = por %p118, %p119
    %p121 = scmp.ne.s32.totalorder %s112, %s113
    %p122 = scmp.eq.s32.totalorder %s18, 0
    %p123 = por %p121, %p122
    %p124 = scmp.ne.s32.totalorder %s112, %s113
    %p125 = scmp.eq.s32.totalorder %s19, 1
    %p126 = por %p124, %p125
    %p128 = scmp.ne.s32.totalorder %s113, %s127
    %p129 = scmp.eq.s32.totalorder %s19, 0
    %p130 = por %p128, %p129
    %s132 = sadd.s32 %s131, 1
    %p135 = scmp.eq.s32.totalorder %s13, 1
    %p136 = scmp.ne.s32.totalorder %s131, %s133
    %p137 = scmp.eq.s32.totalorder %s13, 0
    %p138 = por %p136, %p137
    %p139 = scmp.ne.s32.totalorder %s131, %s133
    %p140 = scmp.eq.s32.totalorder %s18, 1
    %p141 = por %p139, %p140
    %p142 = scmp.ne.s32.totalorder %s133, %s134
    %p143 = scmp.eq.s32.totalorder %s18, 0
    %p144 = por %p142, %p143
    %p145 = scmp.ne.s32.totalorder %s133, %s134
    %p146 = scmp.eq.s32.totalorder %s19, 1
    %p147 = por %p145, %p146
    %p149 = scmp.ne.s32.totalorder %s134, %s148
    %p150 = scmp.eq.s32.totalorder %s19, 0
    %p151 = por %p149, %p150
    %s153 = sadd.s32 %s152, 1
    %p156 = scmp.eq.s32.totalorder %s13, 1
    %p157 = scmp.ne.s32.totalorder %s152, %s154
    %p158 = scmp.eq.s32.totalorder %s13, 0
    %p159 = por %p157, %p158
    %p160 = scmp.ne.s32.totalorder %s152, %s154
    %p161 = scmp.eq.s32.totalorder %s18, 1
    %p162 = por %p160, %p161
    %p163 = scmp.ne.s32.totalorder %s154, %s155
    %p164 = scmp.eq.s32.totalorder %s18, 0
    %p165 = por %p163, %p164
    %p166 = scmp.ne.s32.totalorder %s154, %s155
    %p167 = scmp.eq.s32.totalorder %s19, 1
    %p168 = por %p166, %p167
    %p170 = scmp.ne.s32.totalorder %s155, %s169
    %p171 = scmp.eq.s32.totalorder %s19, 0
    %p172 = por %p170, %p171
    %s173 = ssub.s32 %s13, %s20
    %p174 = scmp.eq.s32.totalorder %s173, 0
    %s176 = sadd.s32 %s175, 1
    %s177 = scalar_select %p174, %s175, %s176
    %p180 = pneg %p174
    %p181 = scmp.eq.s32.totalorder %s13, 1
    %p182 = por %p180, %p181
    %p183 = scmp.ne.s32.totalorder %s175, %s178
    %p184 = scmp.eq.s32.totalorder %s13, 0
    %p185 = por %p183, %p184
    %p186 = scmp.ne.s32.totalorder %s175, %s178
    %p187 = scmp.eq.s32.totalorder %s18, 1
    %p188 = por %p186, %p187
    %p189 = scmp.ne.s32.totalorder %s178, %s179
    %p190 = scmp.eq.s32.totalorder %s18, 0
    %p191 = por %p189, %p190
    %p192 = scmp.ne.s32.totalorder %s178, %s179
    %p193 = scmp.eq.s32.totalorder %s19, 1
    %p194 = por %p192, %p193
    %p196 = scmp.ne.s32.totalorder %s179, %s195
    %p197 = scmp.eq.s32.totalorder %s19, 0
    %p198 = por %p196, %p197
    %p199 = scmp.le.s32.totalorder 1, %s13
    %p200 = scmp.lt.s32.totalorder %s13, 3
    %p201 = pnand %p199, %p200
    %p202 = pneg %p201
    // Predicated region
    $region9: #{tpu_custom_call.1} parent=5 // pred_check
      _
    $region10: #{tpu_custom_call.1} parent=5 // pred_check_branch
      %204 = sbr.rel (%p201) target = $region12
    $region11: #{tpu_custom_call.1} parent=5 // pred_region
      %s205 = ssub.s32 %s13, 1
      // Predicated region
      $region13: #{tpu_custom_call.1} parent=11 // pred_check
        %p206 = pneg %p60
      $region14: #{tpu_custom_call.1} parent=11 // pred_check_branch
        %208 = sbr.rel (%p206) target = $region16
      $region15: #{tpu_custom_call.1} parent=11 // pred_region
        _
      $region16: #{tpu_custom_call.1} parent=11 // pred_fallthru
        _
      // Predicated region
      $region17: #{tpu_custom_call.1} parent=11 // pred_check
        %p209 = pneg %p81
      $region18: #{tpu_custom_call.1} parent=11 // pred_check_branch
        %211 = sbr.rel (%p209) target = $region20
      $region19: #{tpu_custom_call.1} parent=11 // pred_region
        _
      $region20: #{tpu_custom_call.1} parent=11 // pred_fallthru
        _
      // Predicated region
      $region21: #{tpu_custom_call.1} parent=11 // pred_check
        %p212 = pneg %p102
      $region22: #{tpu_custom_call.1} parent=11 // pred_check_branch
        %214 = sbr.rel (%p212) target = $region24
      $region23: #{tpu_custom_call.1} parent=11 // pred_region
        _
      $region24: #{tpu_custom_call.1} parent=11 // pred_fallthru
        _
      // Predicated region
      $region25: #{tpu_custom_call.1} parent=11 // pred_check
        %p215 = pneg %p123
      $region26: #{tpu_custom_call.1} parent=11 // pred_check_branch
        %217 = sbr.rel (%p215) target = $region28
      $region27: #{tpu_custom_call.1} parent=11 // pred_region
        _
      $region28: #{tpu_custom_call.1} parent=11 // pred_fallthru
        _
      // Predicated region
      $region29: #{tpu_custom_call.1} parent=11 // pred_check
        %p218 = pneg %p144
      $region30: #{tpu_custom_call.1} parent=11 // pred_check_branch
        %220 = sbr.rel (%p218) target = $region32
      $region31: #{tpu_custom_call.1} parent=11 // pred_region
        _
      $region32: #{tpu_custom_call.1} parent=11 // pred_fallthru
        _
      // Predicated region
      $region33: #{tpu_custom_call.1} parent=11 // pred_check
        %p221 = pneg %p165
      $region34: #{tpu_custom_call.1} parent=11 // pred_check_branch
        %223 = sbr.rel (%p221) target = $region36
      $region35: #{tpu_custom_call.1} parent=11 // pred_region
        _
      $region36: #{tpu_custom_call.1} parent=11 // pred_fallthru
        _
    $region12: #{tpu_custom_call.1} parent=5 // pred_fallthru
      _
    %p224 = scmp.lt.s32.totalorder %s13, 2
    // Predicated region
    $region37: #{tpu_custom_call.1} parent=5 // pred_check
      %p225 = pneg %p224
    $region38: #{tpu_custom_call.1} parent=5 // pred_check_branch
      %227 = sbr.rel (%p225) target = $region40
    $region39: #{tpu_custom_call.1} parent=5 // pred_region
      // Predicated region
      $region41: #{tpu_custom_call.1} parent=39 // pred_check
        %p228 = pneg %p33
      $region42: #{tpu_custom_call.1} parent=39 // pred_check_branch
        %230 = sbr.rel (%p228) target = $region44
      $region43: #{tpu_custom_call.1} parent=39 // pred_region
        %s231 = smul.u32 21, %s13
        %p232 = scmp.lt.s32.totalorder %s231, 41
        %s233 = scalar_select %p232, %s231, 41
        %s234 = smul.addr %s233, 4
        %s235 = scalar_lea.vmem %s0, %s234
        %s236 = smul.u32 21, %s13
      $region44: #{tpu_custom_call.1} parent=39 // pred_fallthru
        _
    $region40: #{tpu_custom_call.1} parent=5 // pred_fallthru
      _
    %p237 = scmp.le.s32.totalorder 1, %s13
    %p238 = scmp.lt.s32.totalorder %s13, 3
    %p239 = pnand %p237, %p238
    %p240 = pneg %p239
    // Predicated region
    $region45: #{tpu_custom_call.1} parent=5 // pred_check
      _
    $region46: #{tpu_custom_call.1} parent=5 // pred_check_branch
      %242 = sbr.rel (%p239) target = $region48
    $region47: #{tpu_custom_call.1} parent=5 // pred_region
      %s243 = ssub.s32 %s13, 1
      %s244 = smul.u32 21, %s18
      %p245 = scmp.lt.s32.totalorder %s244, 41
      %s246 = scalar_select %p245, %s244, 41
      %s247 = smul.addr %s246, 4
      %s248 = scalar_lea.vmem %s0, %s247
      %p249 = pneg %p39
      %p250 = pneg %p36
      %p251 = pneg %p60
      %p252 = pneg %p57
      %p253 = pneg %p81
      %p254 = pneg %p78
      %p255 = pneg %p102
      %p256 = pneg %p99
      %p257 = pneg %p123
      %p258 = pneg %p120
      %p259 = pneg %p144
      %p260 = pneg %p141
      %p261 = pneg %p165
      %p262 = pneg %p162
      %p263 = pneg %p191
      %p264 = pneg %p188
      %s265 = smul.u32 21, %s18
      %p266 = scmp.lt.s32.totalorder %s265, 41
      %s267 = scalar_select %p266, %s265, 41
      %s268 = smul.addr %s267, 8
      %s269 = scalar_lea.vmem %s7, %s268
      %s270 = smul.u32 21, %s18
      %p271 = scmp.lt.s32.totalorder %s270, 41
      %s272 = scalar_select %p271, %s270, 41
      %s273 = smul.addr %s272, 4
      %s274 = scalar_lea.vmem %s0, %s273
      %s275 = smul.u32 21, %s18
      %s276 = smul.u32 21, %s18
      %p277 = scmp.lt.s32.totalorder %s276, 41
      %s278 = scalar_select %p277, %s276, 41
      %s279 = smul.addr %s278, 8
      %s280 = scalar_lea.vmem %s7, %s279
      %s281 = smul.u32 21, %s18
      %v283 = vld [vmem:[%s274] sm:$0xf]
      %v284 = vld [vmem:[%s274 + $0x4] sm:$0xf]
      %v285 = vld [vmem:[%s274 + $0x8] sm:$0xf]
      %v286 = vld [vmem:[%s274 + $0xc] sm:$0xf]
      %v287 = vld [vmem:[%s274 + $0x10] sm:$0xf]
      %v288 = vld [vmem:[%s274 + $0x14] sm:$0xf]
      %v289 = vld [vmem:[%s274 + $0x18] sm:$0xf]
      %v290 = vld [vmem:[%s274 + $0x1c] sm:$0xf]
      %v291 = vld [vmem:[%s274 + $0x20] sm:$0xf]
      %v292 = vld [vmem:[%s274 + $0x24] sm:$0xf]
      %v293 = vld [vmem:[%s274 + $0x28] sm:$0xf]
      %v294 = vld [vmem:[%s274 + $0x2c] sm:$0xf]
      %v295 = vld [vmem:[%s274 + $0x30] sm:$0xf]
      %v296 = vld [vmem:[%s274 + $0x34] sm:$0xf]
      %v297 = vld [vmem:[%s274 + $0x38] sm:$0xf]
      %v298 = vld [vmem:[%s274 + $0x3c] sm:$0xf]
      %v299 = vld [vmem:[%s274 + $0x40] sm:$0xf]
      %v300 = vld [vmem:[%s274 + $0x44] sm:$0xf]
      %v301 = vld [vmem:[%s274 + $0x48] sm:$0xf]
      %v302 = vld [vmem:[%s274 + $0x4c] sm:$0xf]
      %v303 = vld [vmem:[%s274 + $0x50] sm:$0xf]
      %v304 = vld [vmem:[%s1] sm:$0xf]
      %v305 = vld [vmem:[%s2] sm:$0x1]
      %v307 = vlaneseq
      %v308 = vshrl.u32 %v307, 7
      %v309 = vsub.s32 0, %v308
      %v310 = vrot.slane %v305, %v309
      %v333 = vunpack.c.l.b16 %v283
      %v334 = vunpack.c.l.b16 %v284
      %v335 = vunpack.c.l.b16 %v285
      %v336 = vunpack.c.l.b16 %v286
      %v337 = vunpack.c.l.b16 %v287
      %v338 = vunpack.c.l.b16 %v288
      %v339 = vunpack.c.l.b16 %v289
      %v340 = vunpack.c.l.b16 %v290
      %v341 = vunpack.c.l.b16 %v291
      %v342 = vunpack.c.l.b16 %v292
      %v343 = vunpack.c.l.b16 %v293
      %v344 = vunpack.c.l.b16 %v294
      %v345 = vunpack.c.l.b16 %v295
      %v346 = vunpack.c.l.b16 %v296
      %v347 = vunpack.c.l.b16 %v297
      %v348 = vunpack.c.l.b16 %v298
      %v349 = vunpack.c.l.b16 %v299
      %v350 = vunpack.c.l.b16 %v300
      %v351 = vunpack.c.l.b16 %v301
      %v352 = vunpack.c.l.b16 %v302
      %v353 = vunpack.c.l.b16 %v303
      %v354 = vpack.c.b16 %v334, %v333
      %v355 = vpack.c.b16 %v336, %v335
      %v356 = vpack.c.b16 %v338, %v337
      %v357 = vpack.c.b16 %v340, %v339
      %v358 = vpack.c.b16 %v342, %v341
      %v359 = vpack.c.b16 %v344, %v343
      %v360 = vpack.c.b16 %v346, %v345
      %v361 = vpack.c.b16 %v348, %v347
      %v362 = vpack.c.b16 %v350, %v349
      %v363 = vpack.c.b16 %v352, %v351
      %v364 = vpack.c.b16 %v353, %v353
      %vm365 = vcmask 64512
      %v367 = vsel %vm365, %v354, 0
      %v370 = vsel %vm365, %v355, 0
      %v373 = vsel %vm365, %v356, 0
      %v376 = vsel %vm365, %v357, 0
      %v379 = vsel %vm365, %v358, 0
      %v382 = vsel %vm365, %v359, 0
      %v385 = vsel %vm365, %v360, 0
      %v388 = vsel %vm365, %v361, 0
      %v391 = vsel %vm365, %v362, 0
      %v394 = vsel %vm365, %v363, 0
      %v397 = vsel %vm365, %v364, 0
      %vm399 = vcmask 1043456
      %v401 = vsel %vm399, %v304, 0
      %403 = vmatprep.subr.bf16.mxu0 0
      %404 = vmatpush1.bf16.msra.mxu0 %v401
      %405 = vmatprep.subr.bf16.mxu0 0
      %406 = vmatpush1.bf16.msra.mxu0 0
      %407 = vmatprep.subr.bf16.mxu0 0
      %408 = vmatpush1.bf16.msra.mxu0 0
      %409 = vmatprep.subr.bf16.mxu0 0
      %410 = vmatpush1.bf16.msra.mxu0 0
      %411 = vmatprep.subr.bf16.mxu0 0
      %412 = vmatpush1.bf16.msra.mxu0 0
      %413 = vmatprep.subr.bf16.mxu0 0
      %414 = vmatpush1.bf16.msra.mxu0 0
      %415 = vmatprep.subr.bf16.mxu0 0
      %416 = vmatpush1.bf16.msra.mxu0 0
      %417 = vmatprep.subr.bf16.mxu0 0
      %418 = vmatpush1.bf16.msra.mxu0 0
      %419 = vmatprep.subr.bf16.mxu0 0
      %420 = vmatpush1.bf16.msra.mxu0 0
      %421 = vmatprep.subr.bf16.mxu0 0
      %422 = vmatpush1.bf16.msra.mxu0 0
      %423 = vmatprep.subr.bf16.mxu0 0
      %424 = vmatpush1.bf16.msra.mxu0 0
      %425 = vmatprep.subr.bf16.mxu0 0
      %426 = vmatpush1.bf16.msra.mxu0 0
      %427 = vmatprep.subr.bf16.mxu0 0
      %428 = vmatpush1.bf16.msra.mxu0 0
      %429 = vmatprep.subr.bf16.mxu0 0
      %430 = vmatpush1.bf16.msra.mxu0 0
      %431 = vmatprep.subr.bf16.mxu0 0
      %432 = vmatpush1.bf16.msra.mxu0 0
      %433 = vmatprep.subr.bf16.mxu0 0
      %434 = vmatpush1.bf16.msra.mxu0 0
      %435 = vmatprep.mubr.bf16.mxu0 0
      %436 = vmatmul.mubr.bf16.gmra.mrb[0].mxu0 %v367
      %v437 = vpop.f32.mrb[0].mxu0
      %v438 = vadd.f32 %v310, %v437
      %v439 = vpop.f32.mrb[0].mxu0
      %v440 = vpop.f32.mrb[0].mxu0
      %v441 = vadd.f32 %v310, %v440
      %v442 = vpop.f32.mrb[0].mxu0
      %443 = vmatprep.mubr.bf16.mxu0 0
      %444 = vmatmul.mubr.bf16.gmra.mrb[0].mxu0 %v370
      %v445 = vpop.f32.mrb[0].mxu0
      %v446 = vadd.f32 %v310, %v445
      %v447 = vpop.f32.mrb[0].mxu0
      %v448 = vpop.f32.mrb[0].mxu0
      %v449 = vadd.f32 %v310, %v448
      %v450 = vpop.f32.mrb[0].mxu0
      %451 = vmatprep.mubr.bf16.mxu0 0
      %452 = vmatmul.mubr.bf16.gmra.mrb[0].mxu0 %v373
      %v453 = vpop.f32.mrb[0].mxu0
      %v454 = vadd.f32 %v310, %v453
      %v455 = vpop.f32.mrb[0].mxu0
      %v456 = vpop.f32.mrb[0].mxu0
      %v457 = vadd.f32 %v310, %v456
      %v458 = vpop.f32.mrb[0].mxu0
      %459 = vmatprep.mubr.bf16.mxu0 0
      %460 = vmatmul.mubr.bf16.gmra.mrb[0].mxu0 %v376
      %v461 = vpop.f32.mrb[0].mxu0
      %v462 = vadd.f32 %v310, %v461
      %v463 = vpop.f32.mrb[0].mxu0
      %v464 = vpop.f32.mrb[0].mxu0
      %v465 = vadd.f32 %v310, %v464
      %v466 = vpop.f32.mrb[0].mxu0
      %467 = vmatprep.mubr.bf16.mxu0 0
      %468 = vmatmul.mubr.bf16.gmra.mrb[0].mxu0 %v379
      %v469 = vpop.f32.mrb[0].mxu0
      %v470 = vadd.f32 %v310, %v469
      %v471 = vpop.f32.mrb[0].mxu0
      %v472 = vpop.f32.mrb[0].mxu0
      %v473 = vadd.f32 %v310, %v472
      %v474 = vpop.f32.mrb[0].mxu0
      %475 = vmatprep.mubr.bf16.mxu0 0
      %476 = vmatmul.mubr.bf16.gmra.mrb[0].mxu0 %v382
      %v477 = vpop.f32.mrb[0].mxu0
      %v478 = vadd.f32 %v310, %v477
      %v479 = vpop.f32.mrb[0].mxu0
      %v480 = vpop.f32.mrb[0].mxu0
      %v481 = vadd.f32 %v310, %v480
      %v482 = vpop.f32.mrb[0].mxu0
      %483 = vmatprep.mubr.bf16.mxu0 0
      %484 = vmatmul.mubr.bf16.gmra.mrb[0].mxu0 %v385
      %v485 = vpop.f32.mrb[0].mxu0
      %v486 = vadd.f32 %v310, %v485
      %v487 = vpop.f32.mrb[0].mxu0
      %v488 = vpop.f32.mrb[0].mxu0
      %v489 = vadd.f32 %v310, %v488
      %v490 = vpop.f32.mrb[0].mxu0
      %491 = vmatprep.mubr.bf16.mxu0 0
      %492 = vmatmul.mubr.bf16.gmra.mrb[0].mxu0 %v388
      %v493 = vpop.f32.mrb[0].mxu0
      %v494 = vadd.f32 %v310, %v493
      %v495 = vpop.f32.mrb[0].mxu0
      %v496 = vpop.f32.mrb[0].mxu0
      %v497 = vadd.f32 %v310, %v496
      %v498 = vpop.f32.mrb[0].mxu0
      %499 = vmatprep.mubr.bf16.mxu0 0
      %500 = vmatmul.mubr.bf16.gmra.mrb[0].mxu0 %v391
      %v501 = vpop.f32.mrb[0].mxu0
      %v502 = vadd.f32 %v310, %v501
      %v503 = vpop.f32.mrb[0].mxu0
      %v504 = vpop.f32.mrb[0].mxu0
      %v505 = vadd.f32 %v310, %v504
      %v506 = vpop.f32.mrb[0].mxu0
      %507 = vmatprep.mubr.bf16.mxu0 0
      %508 = vmatmul.mubr.bf16.gmra.mrb[0].mxu0 %v394
      %v509 = vpop.f32.mrb[0].mxu0
      %v510 = vadd.f32 %v310, %v509
      %v511 = vpop.f32.mrb[0].mxu0
      %v512 = vpop.f32.mrb[0].mxu0
      %v513 = vadd.f32 %v310, %v512
      %v514 = vpop.f32.mrb[0].mxu0
      %515 = vmatprep.mubr.bf16.mxu0 0
      %516 = vmatmul.mubr.bf16.gmra.mrb[0].mxu0 %v397
      %v517 = vpop.f32.mrb[0].mxu0
      %v518 = vadd.f32 %v310, %v517
      %v519 = vpop.f32.mrb[0].mxu0
      %v520 = vpop.f32.mrb[0].mxu0
      %v521 = vpop.f32.mrb[0].mxu0
      %522 = vdwg.mxu0
      %v523 = vmax.f32 %v438, 0.0
      %v524 = vmax.f32 %v441, 0.0
      %v525 = vmax.f32 %v446, 0.0
      %v526 = vmax.f32 %v449, 0.0
      %v527 = vmax.f32 %v454, 0.0
      %v528 = vmax.f32 %v457, 0.0
      %v529 = vmax.f32 %v462, 0.0
      %v530 = vmax.f32 %v465, 0.0
      %v531 = vmax.f32 %v470, 0.0
      %v532 = vmax.f32 %v473, 0.0
      %v533 = vmax.f32 %v478, 0.0
      %v534 = vmax.f32 %v481, 0.0
      %v535 = vmax.f32 %v486, 0.0
      %v536 = vmax.f32 %v489, 0.0
      %v537 = vmax.f32 %v494, 0.0
      %v538 = vmax.f32 %v497, 0.0
      %v539 = vmax.f32 %v502, 0.0
      %v540 = vmax.f32 %v505, 0.0
      %v541 = vmax.f32 %v510, 0.0
      %v542 = vmax.f32 %v513, 0.0
      %v543 = vmax.f32 %v518, 0.0
      %v544 = vpack.c.bf16 %v524, %v523
      %v545 = vpack.c.bf16 %v526, %v525
      %v546 = vpack.c.bf16 %v528, %v527
      %v547 = vpack.c.bf16 %v530, %v529
      %v548 = vpack.c.bf16 %v532, %v531
      %v549 = vpack.c.bf16 %v534, %v533
      %v550 = vpack.c.bf16 %v536, %v535
      %v551 = vpack.c.bf16 %v538, %v537
      %v552 = vpack.c.bf16 %v540, %v539
      %v553 = vpack.c.bf16 %v542, %v541
      %v554 = vpack.c.bf16 %v543, %v543
      %v555 = vld [vmem:[%s3] sm:$0xf]
      %v556 = vld [vmem:[%s3 + $0x4] sm:$0xf]
      %v557 = vld [vmem:[%s3 + $0x8] sm:$0xf]
      %v558 = vld [vmem:[%s3 + $0xc] sm:$0xf]
      %v559 = vld [vmem:[%s3 + $0x10] sm:$0xf]
      %v560 = vld [vmem:[%s3 + $0x14] sm:$0xf]
      %v561 = vld [vmem:[%s3 + $0x18] sm:$0xf]
      %v562 = vld [vmem:[%s3 + $0x1c] sm:$0xf]
      %v563 = vld [vmem:[%s3 + $0x20] sm:$0xf]
      %v564 = vld [vmem:[%s3 + $0x24] sm:$0xf]
      %v565 = vld [vmem:[%s3 + $0x28] sm:$0xf]
      %v566 = vld [vmem:[%s3 + $0x2c] sm:$0xf]
      %v567 = vld [vmem:[%s3 + $0x30] sm:$0xf]
      %v568 = vld [vmem:[%s3 + $0x34] sm:$0xf]
      %v569 = vld [vmem:[%s3 + $0x38] sm:$0xf]
      %v570 = vld [vmem:[%s3 + $0x3c] sm:$0xf]
      %v571 = vld [vmem:[%s4] sm:$0x1]
      %v573 = vlaneseq
      %v574 = vshrl.u32 %v573, 7
      %v575 = vsub.s32 0, %v574
      %v576 = vrot.slane %v571, %v575
      %v594 = vunpack.c.l.b16 %v555
      %v595 = vunpack.c.l.b16 %v556
      %v596 = vunpack.c.l.b16 %v557
      %v597 = vunpack.c.l.b16 %v558
      %v598 = vunpack.c.l.b16 %v559
      %v599 = vunpack.c.l.b16 %v560
      %v600 = vunpack.c.l.b16 %v561
      %v601 = vunpack.c.l.b16 %v562
      %v602 = vunpack.c.l.b16 %v563
      %v603 = vunpack.c.l.b16 %v564
      %v604 = vunpack.c.l.b16 %v565
      %v605 = vunpack.c.l.b16 %v566
      %v606 = vunpack.c.l.b16 %v567
      %v607 = vunpack.c.l.b16 %v568
      %v608 = vunpack.c.l.b16 %v569
      %v609 = vunpack.c.l.b16 %v570
      %v610 = vpack.c.b16 %v595, %v594
      %v611 = vpack.c.b16 %v597, %v596
      %v612 = vpack.c.b16 %v599, %v598
      %v613 = vpack.c.b16 %v601, %v600
      %v614 = vpack.c.b16 %v603, %v602
      %v615 = vpack.c.b16 %v605, %v604
      %v616 = vpack.c.b16 %v607, %v606
      %v617 = vpack.c.b16 %v609, %v608
      %626 = vmatprep.subr.bf16.mxu0 0
      %627 = vmatpush1.bf16.msra.mxu0 %v610
      %628 = vmatprep.subr.bf16.mxu0 0
      %629 = vmatpush1.bf16.msra.mxu0 %v611
      %630 = vmatprep.subr.bf16.mxu0 0
      %631 = vmatpush1.bf16.msra.mxu0 %v612
      %632 = vmatprep.subr.bf16.mxu0 0
      %633 = vmatpush1.bf16.msra.mxu0 %v613
      %634 = vmatprep.subr.bf16.mxu0 0
      %635 = vmatpush1.bf16.msra.mxu0 %v614
      %636 = vmatprep.subr.bf16.mxu0 0
      %637 = vmatpush1.bf16.msra.mxu0 %v615
      %638 = vmatprep.subr.bf16.mxu0 0
      %639 = vmatpush1.bf16.msra.mxu0 %v616
      %640 = vmatprep.subr.bf16.mxu0 0
      %641 = vmatpush1.bf16.msra.mxu0 %v617
      %642 = vmatprep.subr.bf16.mxu0 0
      %643 = vmatpush1.bf16.msra.mxu0 0
      %644 = vmatprep.subr.bf16.mxu0 0
      %645 = vmatpush1.bf16.msra.mxu0 0
      %646 = vmatprep.subr.bf16.mxu0 0
      %647 = vmatpush1.bf16.msra.mxu0 0
      %648 = vmatprep.subr.bf16.mxu0 0
      %649 = vmatpush1.bf16.msra.mxu0 0
      %650 = vmatprep.subr.bf16.mxu0 0
      %651 = vmatpush1.bf16.msra.mxu0 0
      %652 = vmatprep.subr.bf16.mxu0 0
      %653 = vmatpush1.bf16.msra.mxu0 0
      %654 = vmatprep.subr.bf16.mxu0 0
      %655 = vmatpush1.bf16.msra.mxu0 0
      %656 = vmatprep.subr.bf16.mxu0 0
      %657 = vmatpush1.bf16.msra.mxu0 0
      %658 = vmatprep.mubr.bf16.mxu0 0
      %659 = vmatmul.mubr.bf16.gmra.mrb[0].mxu0 %v544
      %v660 = vpop.f32.mrb[0].mxu0
      %v661 = vadd.f32 %v576, %v660
      %v662 = vpop.f32.mrb[0].mxu0
      %v663 = vpop.f32.mrb[0].mxu0
      %v664 = vadd.f32 %v576, %v663
      %v665 = vpop.f32.mrb[0].mxu0
      %666 = vmatprep.mubr.bf16.mxu0 0
      %667 = vmatmul.mubr.bf16.gmra.mrb[0].mxu0 %v545
      %v668 = vpop.f32.mrb[0].mxu0
      %v669 = vadd.f32 %v576, %v668
      %v670 = vpop.f32.mrb[0].mxu0
      %v671 = vpop.f32.mrb[0].mxu0
      %v672 = vadd.f32 %v576, %v671
      %v673 = vpop.f32.mrb[0].mxu0
      %674 = vmatprep.mubr.bf16.mxu0 0
      %675 = vmatmul.mubr.bf16.gmra.mrb[0].mxu0 %v546
      %v676 = vpop.f32.mrb[0].mxu0
      %v677 = vadd.f32 %v576, %v676
      %v678 = vpop.f32.mrb[0].mxu0
      %v679 = vpop.f32.mrb[0].mxu0
      %v680 = vadd.f32 %v576, %v679
      %v681 = vpop.f32.mrb[0].mxu0
      %682 = vmatprep.mubr.bf16.mxu0 0
      %683 = vmatmul.mubr.bf16.gmra.mrb[0].mxu0 %v547
      %v684 = vpop.f32.mrb[0].mxu0
      %v685 = vadd.f32 %v576, %v684
      %v686 = vpop.f32.mrb[0].mxu0
      %v687 = vpop.f32.mrb[0].mxu0
      %v688 = vadd.f32 %v576, %v687
      %v689 = vpop.f32.mrb[0].mxu0
      %690 = vmatprep.mubr.bf16.mxu0 0
      %691 = vmatmul.mubr.bf16.gmra.mrb[0].mxu0 %v548
      %v692 = vpop.f32.mrb[0].mxu0
      %v693 = vadd.f32 %v576, %v692
      %v694 = vpop.f32.mrb[0].mxu0
      %v695 = vpop.f32.mrb[0].mxu0
      %v696 = vadd.f32 %v576, %v695
      %v697 = vpop.f32.mrb[0].mxu0
      %698 = vmatprep.mubr.bf16.mxu0 0
      %699 = vmatmul.mubr.bf16.gmra.mrb[0].mxu0 %v549
      %v700 = vpop.f32.mrb[0].mxu0
      %v701 = vadd.f32 %v576, %v700
      %v702 = vpop.f32.mrb[0].mxu0
      %v703 = vpop.f32.mrb[0].mxu0
      %v704 = vadd.f32 %v576, %v703
      %v705 = vpop.f32.mrb[0].mxu0
      %706 = vmatprep.mubr.bf16.mxu0 0
      %707 = vmatmul.mubr.bf16.gmra.mrb[0].mxu0 %v550
      %v708 = vpop.f32.mrb[0].mxu0
      %v709 = vadd.f32 %v576, %v708
      %v710 = vpop.f32.mrb[0].mxu0
      %v711 = vpop.f32.mrb[0].mxu0
      %v712 = vadd.f32 %v576, %v711
      %v713 = vpop.f32.mrb[0].mxu0
      %714 = vmatprep.mubr.bf16.mxu0 0
      %715 = vmatmul.mubr.bf16.gmra.mrb[0].mxu0 %v551
      %v716 = vpop.f32.mrb[0].mxu0
      %v717 = vadd.f32 %v576, %v716
      %v718 = vpop.f32.mrb[0].mxu0
      %v719 = vpop.f32.mrb[0].mxu0
      %v720 = vadd.f32 %v576, %v719
      %v721 = vpop.f32.mrb[0].mxu0
      %722 = vmatprep.mubr.bf16.mxu0 0
      %723 = vmatmul.mubr.bf16.gmra.mrb[0].mxu0 %v552
      %v724 = vpop.f32.mrb[0].mxu0
      %v725 = vadd.f32 %v576, %v724
      %v726 = vpop.f32.mrb[0].mxu0
      %v727 = vpop.f32.mrb[0].mxu0
      %v728 = vadd.f32 %v576, %v727
      %v729 = vpop.f32.mrb[0].mxu0
      %730 = vmatprep.mubr.bf16.mxu0 0
      %731 = vmatmul.mubr.bf16.gmra.mrb[0].mxu0 %v553
      %v732 = vpop.f32.mrb[0].mxu0
      %v733 = vadd.f32 %v576, %v732
      %v734 = vpop.f32.mrb[0].mxu0
      %v735 = vpop.f32.mrb[0].mxu0
      %v736 = vadd.f32 %v576, %v735
      %v737 = vpop.f32.mrb[0].mxu0
      %738 = vmatprep.mubr.bf16.mxu0 0
      %739 = vmatmul.mubr.bf16.gmra.mrb[0].mxu0 %v554
      %v740 = vpop.f32.mrb[0].mxu0
      %v741 = vadd.f32 %v576, %v740
      %v742 = vpop.f32.mrb[0].mxu0
      %v743 = vpop.f32.mrb[0].mxu0
      %v744 = vpop.f32.mrb[0].mxu0
      %745 = vdwg.mxu0
      %v746 = vmax.f32 %v661, 0.0
      %v747 = vmax.f32 %v664, 0.0
      %v748 = vmax.f32 %v669, 0.0
      %v749 = vmax.f32 %v672, 0.0
      %v750 = vmax.f32 %v677, 0.0
      %v751 = vmax.f32 %v680, 0.0
      %v752 = vmax.f32 %v685, 0.0
      %v753 = vmax.f32 %v688, 0.0
      %v754 = vmax.f32 %v693, 0.0
      %v755 = vmax.f32 %v696, 0.0
      %v756 = vmax.f32 %v701, 0.0
      %v757 = vmax.f32 %v704, 0.0
      %v758 = vmax.f32 %v709, 0.0
      %v759 = vmax.f32 %v712, 0.0
      %v760 = vmax.f32 %v717, 0.0
      %v761 = vmax.f32 %v720, 0.0
      %v762 = vmax.f32 %v725, 0.0
      %v763 = vmax.f32 %v728, 0.0
      %v764 = vmax.f32 %v733, 0.0
      %v765 = vmax.f32 %v736, 0.0
      %v766 = vmax.f32 %v741, 0.0
      %v767 = vpack.c.bf16 %v747, %v746
      %v768 = vpack.c.bf16 %v749, %v748
      %v769 = vpack.c.bf16 %v751, %v750
      %v770 = vpack.c.bf16 %v753, %v752
      %v771 = vpack.c.bf16 %v755, %v754
      %v772 = vpack.c.bf16 %v757, %v756
      %v773 = vpack.c.bf16 %v759, %v758
      %v774 = vpack.c.bf16 %v761, %v760
      %v775 = vpack.c.bf16 %v763, %v762
      %v776 = vpack.c.bf16 %v765, %v764
      %v777 = vpack.c.bf16 %v766, %v766
      %v778 = vld [vmem:[%s5] sm:$0xf]
      %v779 = vld [vmem:[%s5 + $0x4] sm:$0xf]
      %v780 = vld [vmem:[%s5 + $0x8] sm:$0xf]
      %v781 = vld [vmem:[%s5 + $0xc] sm:$0xf]
      %v782 = vld [vmem:[%s5 + $0x10] sm:$0xf]
      %v783 = vld [vmem:[%s5 + $0x14] sm:$0xf]
      %v784 = vld [vmem:[%s5 + $0x18] sm:$0xf]
      %v785 = vld [vmem:[%s5 + $0x1c] sm:$0xf]
      %v786 = vld [vmem:[%s5 + $0x20] sm:$0xf]
      %v787 = vld [vmem:[%s5 + $0x24] sm:$0xf]
      %v788 = vld [vmem:[%s5 + $0x28] sm:$0xf]
      %v789 = vld [vmem:[%s5 + $0x2c] sm:$0xf]
      %v790 = vld [vmem:[%s5 + $0x30] sm:$0xf]
      %v791 = vld [vmem:[%s5 + $0x34] sm:$0xf]
      %v792 = vld [vmem:[%s5 + $0x38] sm:$0xf]
      %v793 = vld [vmem:[%s5 + $0x3c] sm:$0xf]
      %v810 = vunpack.c.l.b16 %v778
      %v811 = vunpack.c.l.b16 %v779
      %v812 = vunpack.c.l.b16 %v780
      %v813 = vunpack.c.l.b16 %v781
      %v814 = vunpack.c.l.b16 %v782
      %v815 = vunpack.c.l.b16 %v783
      %v816 = vunpack.c.l.b16 %v784
      %v817 = vunpack.c.l.b16 %v785
      %v818 = vunpack.c.l.b16 %v786
      %v819 = vunpack.c.l.b16 %v787
      %v820 = vunpack.c.l.b16 %v788
      %v821 = vunpack.c.l.b16 %v789
      %v822 = vunpack.c.l.b16 %v790
      %v823 = vunpack.c.l.b16 %v791
      %v824 = vunpack.c.l.b16 %v792
      %v825 = vunpack.c.l.b16 %v793
      %v826 = vpack.c.b16 %v811, %v810
      %v827 = vpack.c.b16 %v813, %v812
      %v828 = vpack.c.b16 %v815, %v814
      %v829 = vpack.c.b16 %v817, %v816
      %v830 = vpack.c.b16 %v819, %v818
      %v831 = vpack.c.b16 %v821, %v820
      %v832 = vpack.c.b16 %v823, %v822
      %v833 = vpack.c.b16 %v825, %v824
      %842 = vmatprep.subr.bf16.mxu0 0
      %843 = vmatpush1.bf16.msra.mxu0 %v826
      %844 = vmatprep.subr.bf16.mxu0 0
      %845 = vmatpush1.bf16.msra.mxu0 %v827
      %846 = vmatprep.subr.bf16.mxu0 0
      %847 = vmatpush1.bf16.msra.mxu0 %v828
      %848 = vmatprep.subr.bf16.mxu0 0
      %849 = vmatpush1.bf16.msra.mxu0 %v829
      %850 = vmatprep.subr.bf16.mxu0 0
      %851 = vmatpush1.bf16.msra.mxu0 %v830
      %852 = vmatprep.subr.bf16.mxu0 0
      %853 = vmatpush1.bf16.msra.mxu0 %v831
      %854 = vmatprep.subr.bf16.mxu0 0
      %855 = vmatpush1.bf16.msra.mxu0 %v832
      %856 = vmatprep.subr.bf16.mxu0 0
      %857 = vmatpush1.bf16.msra.mxu0 %v833
      %858 = vmatprep.subr.bf16.mxu0 0
      %859 = vmatpush1.bf16.msra.mxu0 0
      %860 = vmatprep.subr.bf16.mxu0 0
      %861 = vmatpush1.bf16.msra.mxu0 0
      %862 = vmatprep.subr.bf16.mxu0 0
      %863 = vmatpush1.bf16.msra.mxu0 0
      %864 = vmatprep.subr.bf16.mxu0 0
      %865 = vmatpush1.bf16.msra.mxu0 0
      %866 = vmatprep.subr.bf16.mxu0 0
      %867 = vmatpush1.bf16.msra.mxu0 0
      %868 = vmatprep.subr.bf16.mxu0 0
      %869 = vmatpush1.bf16.msra.mxu0 0
      %870 = vmatprep.subr.bf16.mxu0 0
      %871 = vmatpush1.bf16.msra.mxu0 0
      %872 = vmatprep.subr.bf16.mxu0 0
      %873 = vmatpush1.bf16.msra.mxu0 0
      %874 = vmatprep.mubr.bf16.mxu0 0
      %875 = vmatmul.mubr.bf16.gmra.mrb[0].mxu0 %v767
      %v876 = vpop.f32.mrb[0].mxu0
      %v877 = vadd.f32 0.0, %v876
      %v878 = vpop.f32.mrb[0].mxu0
      %v879 = vpop.f32.mrb[0].mxu0
      %v880 = vadd.f32 0.0, %v879
      %v881 = vpop.f32.mrb[0].mxu0
      %882 = vmatprep.mubr.bf16.mxu0 0
      %883 = vmatmul.mubr.bf16.gmra.mrb[0].mxu0 %v768
      %v884 = vpop.f32.mrb[0].mxu0
      %v885 = vadd.f32 0.0, %v884
      %v886 = vpop.f32.mrb[0].mxu0
      %v887 = vpop.f32.mrb[0].mxu0
      %v888 = vadd.f32 0.0, %v887
      %v889 = vpop.f32.mrb[0].mxu0
      %890 = vmatprep.mubr.bf16.mxu0 0
      %891 = vmatmul.mubr.bf16.gmra.mrb[0].mxu0 %v769
      %v892 = vpop.f32.mrb[0].mxu0
      %v893 = vadd.f32 0.0, %v892
      %v894 = vpop.f32.mrb[0].mxu0
      %v895 = vpop.f32.mrb[0].mxu0
      %v896 = vadd.f32 0.0, %v895
      %v897 = vpop.f32.mrb[0].mxu0
      %898 = vmatprep.mubr.bf16.mxu0 0
      %899 = vmatmul.mubr.bf16.gmra.mrb[0].mxu0 %v770
      %v900 = vpop.f32.mrb[0].mxu0
      %v901 = vadd.f32 0.0, %v900
      %v902 = vpop.f32.mrb[0].mxu0
      %v903 = vpop.f32.mrb[0].mxu0
      %v904 = vadd.f32 0.0, %v903
      %v905 = vpop.f32.mrb[0].mxu0
      %906 = vmatprep.mubr.bf16.mxu0 0
      %907 = vmatmul.mubr.bf16.gmra.mrb[0].mxu0 %v771
      %v908 = vpop.f32.mrb[0].mxu0
      %v909 = vadd.f32 0.0, %v908
      %v910 = vpop.f32.mrb[0].mxu0
      %v911 = vpop.f32.mrb[0].mxu0
      %v912 = vadd.f32 0.0, %v911
      %v913 = vpop.f32.mrb[0].mxu0
      %914 = vmatprep.mubr.bf16.mxu0 0
      %915 = vmatmul.mubr.bf16.gmra.mrb[0].mxu0 %v772
      %v916 = vpop.f32.mrb[0].mxu0
      %v917 = vadd.f32 0.0, %v916
      %v918 = vpop.f32.mrb[0].mxu0
      %v919 = vpop.f32.mrb[0].mxu0
      %v920 = vadd.f32 0.0, %v919
      %v921 = vpop.f32.mrb[0].mxu0
      %922 = vmatprep.mubr.bf16.mxu0 0
      %923 = vmatmul.mubr.bf16.gmra.mrb[0].mxu0 %v773
      %v924 = vpop.f32.mrb[0].mxu0
      %v925 = vadd.f32 0.0, %v924
      %v926 = vpop.f32.mrb[0].mxu0
      %v927 = vpop.f32.mrb[0].mxu0
      %v928 = vadd.f32 0.0, %v927
      %v929 = vpop.f32.mrb[0].mxu0
      %930 = vmatprep.mubr.bf16.mxu0 0
      %931 = vmatmul.mubr.bf16.gmra.mrb[0].mxu0 %v774
      %v932 = vpop.f32.mrb[0].mxu0
      %v933 = vadd.f32 0.0, %v932
      %v934 = vpop.f32.mrb[0].mxu0
      %v935 = vpop.f32.mrb[0].mxu0
      %v936 = vadd.f32 0.0, %v935
      %v937 = vpop.f32.mrb[0].mxu0
      %938 = vmatprep.mubr.bf16.mxu0 0
      %939 = vmatmul.mubr.bf16.gmra.mrb[0].mxu0 %v775
      %v940 = vpop.f32.mrb[0].mxu0
      %v941 = vadd.f32 0.0, %v940
      %v942 = vpop.f32.mrb[0].mxu0
      %v943 = vpop.f32.mrb[0].mxu0
      %v944 = vadd.f32 0.0, %v943
      %v945 = vpop.f32.mrb[0].mxu0
      %946 = vmatprep.mubr.bf16.mxu0 0
      %947 = vmatmul.mubr.bf16.gmra.mrb[0].mxu0 %v776
      %v948 = vpop.f32.mrb[0].mxu0
      %v949 = vadd.f32 0.0, %v948
      %v950 = vpop.f32.mrb[0].mxu0
      %v951 = vpop.f32.mrb[0].mxu0
      %v952 = vadd.f32 0.0, %v951
      %v953 = vpop.f32.mrb[0].mxu0
      %954 = vmatprep.mubr.bf16.mxu0 0
      %955 = vmatmul.mubr.bf16.gmra.mrb[0].mxu0 %v777
      %v956 = vpop.f32.mrb[0].mxu0
      %v957 = vadd.f32 0.0, %v956
      %v958 = vpop.f32.mrb[0].mxu0
      %v959 = vpop.f32.mrb[0].mxu0
      %v960 = vpop.f32.mrb[0].mxu0
      %961 = vdwg.mxu0
      %v962 = vld [vmem:[%s6] sm:$0x1]
      %v964 = vlaneseq
      %v965 = vshrl.u32 %v964, 7
      %v966 = vsub.s32 0, %v965
      %v967 = vrot.slane %v962, %v966
      %v969 = vadd.f32 %v877, %v967
      %v970 = vadd.f32 %v880, %v967
      %v971 = vadd.f32 %v885, %v967
      %v972 = vadd.f32 %v888, %v967
      %v973 = vadd.f32 %v893, %v967
      %v974 = vadd.f32 %v896, %v967
      %v975 = vadd.f32 %v901, %v967
      %v976 = vadd.f32 %v904, %v967
      %v977 = vadd.f32 %v909, %v967
      %v978 = vadd.f32 %v912, %v967
      %v979 = vadd.f32 %v917, %v967
      %v980 = vadd.f32 %v920, %v967
      %v981 = vadd.f32 %v925, %v967
      %v982 = vadd.f32 %v928, %v967
      %v983 = vadd.f32 %v933, %v967
      %v984 = vadd.f32 %v936, %v967
      %v985 = vadd.f32 %v941, %v967
      %v986 = vadd.f32 %v944, %v967
      %v987 = vadd.f32 %v949, %v967
      %v988 = vadd.f32 %v952, %v967
      %v989 = vadd.f32 %v957, %v967
      %vm990 = vcmask 31744
      %991 = vst.msk [vmem:[%s280] sm:$0xff] %vm990, %v969
      %992 = vst.msk [vmem:[%s280 + $0x8] sm:$0xff] %vm990, %v970
      %993 = vst.msk [vmem:[%s280 + $0x10] sm:$0xff] %vm990, %v971
      %994 = vst.msk [vmem:[%s280 + $0x18] sm:$0xff] %vm990, %v972
      %995 = vst.msk [vmem:[%s280 + $0x20] sm:$0xff] %vm990, %v973
      %996 = vst.msk [vmem:[%s280 + $0x28] sm:$0xff] %vm990, %v974
      %997 = vst.msk [vmem:[%s280 + $0x30] sm:$0xff] %vm990, %v975
      %998 = vst.msk [vmem:[%s280 + $0x38] sm:$0xff] %vm990, %v976
      %999 = vst.msk [vmem:[%s280 + $0x40] sm:$0xff] %vm990, %v977
      %1000 = vst.msk [vmem:[%s280 + $0x48] sm:$0xff] %vm990, %v978
      %1001 = vst.msk [vmem:[%s280 + $0x50] sm:$0xff] %vm990, %v979
      %1002 = vst.msk [vmem:[%s280 + $0x58] sm:$0xff] %vm990, %v980
      %1003 = vst.msk [vmem:[%s280 + $0x60] sm:$0xff] %vm990, %v981
      %1004 = vst.msk [vmem:[%s280 + $0x68] sm:$0xff] %vm990, %v982
      %1005 = vst.msk [vmem:[%s280 + $0x70] sm:$0xff] %vm990, %v983
      %1006 = vst.msk [vmem:[%s280 + $0x78] sm:$0xff] %vm990, %v984
      %1007 = vst.msk [vmem:[%s280 + $0x80] sm:$0xff] %vm990, %v985
      %1008 = vst.msk [vmem:[%s280 + $0x88] sm:$0xff] %vm990, %v986
      %1009 = vst.msk [vmem:[%s280 + $0x90] sm:$0xff] %vm990, %v987
      %1010 = vst.msk [vmem:[%s280 + $0x98] sm:$0xff] %vm990, %v988
      %1011 = vst.msk [vmem:[%s280 + $0xa0] sm:$0xff] %vm990, %v989
      %s1012 = smul.u32 21, %s18
      %p1013 = scmp.lt.s32.totalorder %s1012, 41
      %s1014 = scalar_select %p1013, %s1012, 41
      %s1015 = smul.addr %s1014, 8
      %s1016 = scalar_lea.vmem %s7, %s1015
      // Predicated region
      $region49: #{tpu_custom_call.1} parent=47 // pred_check
        %p1017 = pneg %p188
      $region50: #{tpu_custom_call.1} parent=47 // pred_check_branch
        %1019 = sbr.rel (%p1017) target = $region52
      $region51: #{tpu_custom_call.1} parent=47 // pred_region
        %s1020 = smul.u32 21, %s18
      $region52: #{tpu_custom_call.1} parent=47 // pred_fallthru
        _
    $region48: #{tpu_custom_call.1} parent=5 // pred_fallthru
      _
    %p1021 = scmp.le.s32.totalorder 2, %s13
    // Predicated region
    $region53: #{tpu_custom_call.1} parent=5 // pred_check
      %p1022 = pneg %p1021
    $region54: #{tpu_custom_call.1} parent=5 // pred_check_branch
      %1024 = sbr.rel (%p1022) target = $region56
    $region55: #{tpu_custom_call.1} parent=5 // pred_region
      %s1025 = ssub.s32 %s13, 2
      // Predicated region
      $region57: #{tpu_custom_call.1} parent=55 // pred_check
        %p1026 = pneg %p194
      $region58: #{tpu_custom_call.1} parent=55 // pred_check_branch
        %1028 = sbr.rel (%p1026) target = $region60
      $region59: #{tpu_custom_call.1} parent=55 // pred_region
        %s1029 = smul.u32 21, %s19
        %p1030 = scmp.lt.s32.totalorder %s1029, 41
        %s1031 = scalar_select %p1030, %s1029, 41
        %s1032 = smul.addr %s1031, 8
        %s1033 = scalar_lea.vmem %s7, %s1032
      $region60: #{tpu_custom_call.1} parent=55 // pred_fallthru
        _
    $region56: #{tpu_custom_call.1} parent=5 // pred_fallthru
      _
  $region6: #{tpu_custom_call.1} parent=0 // loop_footer
    %s17 = sadd.s32 1, %s13
  $region7: #{tpu_custom_call.1} parent=0 // loop_footer_branch
    %12 = sbr.rel target = $region3
  $region8: #{tpu_custom_call.1} parent=0 // loop_exit
    _

</llo_original>
